<compile_context>
chip_gen: v5e
topology: v5e:2x2
jax: 0.10.0
libtpu: 0.0.40
codegen_flags: <defaults>
</compile_context>

<pallas_src>
import functools

import jax
import jax.numpy as jnp
from jax.experimental import pallas as pl
from jax.experimental.pallas import tpu as pltpu


# Fixed hidden sizes from the PyTorch module.
_H1 = 256   # e1 out / d2 out
_H2 = 128   # e2 out / d1 out

# Packed weight-slab column offsets (all 128-aligned).
_OFF_E1, _W_E1 = 0, 256        # e1 : real rows [0, S+A)
_OFF_E2, _W_E2 = 256, 128      # e2 : rows [0, 256)
_OFF_MS, _W_MS = 384, 128      # fused [mean | log_std] head, real cols [0, 2L)
_OFF_D1S, _W_D1S = 512, 128    # d1 state part : real rows [0, S)
_OFF_D1Z, _W_D1Z = 640, 128    # d1 latent part: real rows [0, L)
_OFF_D2, _W_D2 = 768, 256      # d2 : rows [0, 128)
_OFF_D3, _W_D3 = 1024, 128     # d3 head, real cols [0, A)
_C_TOTAL = 1152
_R_TOTAL = 256                 # slab rows = max input dim (e2 / d3 use all 256)


# ----------------------------------------------------------------------------
# Pallas kernel: whole forward pass (two 3-layer MLPs + reparameterisation)
# ----------------------------------------------------------------------------
def _residual_vae_kernel(sa_ref, eps_ref, w_ref, b_ref, out_ref,
                         *, max_action, latent_dim, action_dim):
    f32, bf16 = jnp.float32, jnp.bfloat16
    L, A = latent_dim, action_dim

    sa = sa_ref[...]                       # (TB, 128) bf16, [state | action | 0...]

    # ---- encoder ------------------------------------------------------------
    h = jnp.dot(sa, w_ref[0:128, _OFF_E1:_OFF_E1 + _W_E1],
                preferred_element_type=f32) + b_ref[:, _OFF_E1:_OFF_E1 + _W_E1]
    h = jnp.maximum(h, 0.0)

    h = jnp.dot(h.astype(bf16), w_ref[0:256, _OFF_E2:_OFF_E2 + _W_E2],
                preferred_element_type=f32) + b_ref[:, _OFF_E2:_OFF_E2 + _W_E2]
    h = jnp.maximum(h, 0.0)

    # ---- latent heads (fused, lane-padded to 128) ---------------------------
    ms = jnp.dot(h.astype(bf16), w_ref[0:128, _OFF_MS:_OFF_MS + _W_MS],
                 preferred_element_type=f32) + b_ref[:, _OFF_MS:_OFF_MS + _W_MS]
    # Pack [mean | std | 0...] in place: exp() only the log_std lanes.  The
    # PyTorch spec does NOT clamp log_std, so neither do we.  jnp.where evaluates
    # exp() on the mean/padding lanes too; those values are selected away and TPUs
    # don't trap, so this is harmless -- do not "fix" it into a NaN-propagating
    # form.  Padded lanes (>= 2L) stay exactly 0 (zero weight cols / bias).
    col = jax.lax.broadcasted_iota(jnp.int32, ms.shape, 1)
    mean_std = jnp.where((col >= L) & (col < 2 * L), jnp.exp(ms), ms)

    # Reparameterisation without unaligned lane slices: bring std onto the mean
    # lanes with an XLU roll (free slot), then z = mean + std * eps.  eps is
    # zero-padded past lane L, so other lanes stay inert.
    std_on_mean_lanes = pltpu.roll(mean_std, shift=128 - L, axis=1)
    z_full = mean_std + std_on_mean_lanes * eps_ref[...]     # lanes [0, L) == z

    # ---- decoder ------------------------------------------------------------
    # Keep d1 as ONE summed expression so Mosaic can chain both matmuls into the
    # same MXU accumulator (in-place MRB accumulate on v7x; harmless elsewhere).
    # Weight rows for the action/pad lanes of `sa` and the std/pad lanes of
    # `z_full` are zero, so the 128-lane operands need no slicing.
    d = (jnp.dot(sa, w_ref[0:128, _OFF_D1S:_OFF_D1S + _W_D1S],
                 preferred_element_type=f32)
         + jnp.dot(z_full.astype(bf16), w_ref[0:128, _OFF_D1Z:_OFF_D1Z + _W_D1Z],
                   preferred_element_type=f32)
         + b_ref[:, _OFF_D1S:_OFF_D1S + _W_D1S])
    d = jnp.maximum(d, 0.0)

    d = jnp.dot(d.astype(bf16), w_ref[0:128, _OFF_D2:_OFF_D2 + _W_D2],
                preferred_element_type=f32) + b_ref[:, _OFF_D2:_OFF_D2 + _W_D2]
    d = jnp.maximum(d, 0.0)

    u = max_action * jnp.tanh(
        jnp.dot(d.astype(bf16), w_ref[0:256, _OFF_D3:_OFF_D3 + _W_D3],
                preferred_element_type=f32) + b_ref[:, _OFF_D3:_OFF_D3 + _W_D3])
    # d3's padded lanes have zero weights & bias -> tanh(0) == 0, so u is exactly
    # zero outside [0, A).

    # ---- single lane-dense packed output: [ u | mean | std | 0... ] ---------
    # The roll places mean_std at lanes [A, A+2L); its wrap-around lanes are all
    # zeros, so a plain add yields the packed row with unmasked full-lane stores.
    out_ref[...] = u + pltpu.roll(mean_std, shift=A, axis=1)


# ----------------------------------------------------------------------------
# Wrapper
# ----------------------------------------------------------------------------
def _round_up(x, m):
    return (x + m - 1) // m * m


def residual_vae_forward(state, action_seq_flat, eps, packed, max_action,
                         *, block_b=256):
    """Pallas forward of ResidualVAE.  Returns (u, mean, std)."""
    B, S = state.shape
    A = action_seq_flat.shape[1]
    L = eps.shape[1]
    assert S + A <= 128 and A + 2 * L <= 128, "lane packing assumes small dims"

    w_slab, b_slab = packed["w_slab"], packed["b_slab"]

    # Batch tiling: weight/bias slabs stay VMEM-resident (constant index_map)
    # while activation tiles stream.  TB is a multiple of 16 (bf16 sublane
    # packing).  v5e/v6e (128 MiB VMEM): block_b of 512-1024 is also fine;
    # v7x (64 MiB VMEM, 2 TCs): keep block_b <= 256 and let "parallel" split
    # batch tiles across the two TensorCores.
    b_pad = _round_up(B, 16)
    if b_pad <= block_b:
        tb = b_pad
    else:
        tb = block_b
        b_pad = _round_up(b_pad, tb)
    grid = (b_pad // tb,)

    # One lane-padded bf16 activation slab [state | action | 0...]: one input DMA,
    # a single e1 matmul, and it also feeds d1's state half.
    sa = jnp.zeros((b_pad, 128), jnp.bfloat16)
    sa = sa.at[:B, :S].set(state.astype(jnp.bfloat16))
    sa = sa.at[:B, S:S + A].set(action_seq_flat.astype(jnp.bfloat16))

    eps_pad = jnp.zeros((b_pad, 128), jnp.float32).at[:B, :L].set(eps)

    kernel = functools.partial(_residual_vae_kernel, max_action=float(max_action),
                               latent_dim=L, action_dim=A)

    flops_per_row = 2 * (128 * 256 + 256 * 128 + 128 * 128 + 128 * 128
                         + 128 * 128 + 128 * 256 + 256 * 128)
    cost = pl.CostEstimate(
        flops=int(b_pad * flops_per_row),
        transcendentals=int(b_pad * 256),          # exp + tanh over 128 lanes each
        bytes_accessed=int(w_slab.size * 2 + b_slab.size * 4
                           + sa.size * 2 + eps_pad.size * 4 + b_pad * 128 * 4),
    )

    out = pl.pallas_call(
        kernel,
        out_shape=jax.ShapeDtypeStruct((b_pad, 128), jnp.float32),
        grid=grid,
        in_specs=[
            pl.BlockSpec((tb, 128), lambda i: (i, 0)),               # activations
            pl.BlockSpec((tb, 128), lambda i: (i, 0)),               # eps
            pl.BlockSpec((_R_TOTAL, _C_TOTAL), lambda i: (0, 0)),    # weights (resident)
            pl.BlockSpec((1, _C_TOTAL), lambda i: (0, 0)),           # biases (resident)
        ],
        out_specs=pl.BlockSpec((tb, 128), lambda i: (i, 0)),
        compiler_params=pltpu.CompilerParams(
            dimension_semantics=("parallel",)),
        cost_estimate=cost,
    )(sa, eps_pad, w_slab, b_slab)

    u = out[:B, :A]
    mean = out[:B, A:A + L]
    std = out[:B, A + L:A + 2 * L]
    return u, mean, std


# ----------------------------------------------------------------------------
# Deterministic parameter init, host-side packing, reference, driver
# ----------------------------------------------------------------------------
def make_params(key, state_dim, action_dim, latent_dim):
    ks = jax.random.split(key, 14)
    scale = 0.1
    w = lambda k, shape: (scale * jax.random.normal(k, shape)).astype(jnp.bfloat16)
    b = lambda k, shape: (scale * jax.random.normal(k, shape)).astype(jnp.float32)
    return {
        "w_e1": w(ks[0], (state_dim + action_dim, _H1)), "b_e1": b(ks[1], (_H1,)),
        "w_e2": w(ks[2], (_H1, _H2)), "b_e2": b(ks[3], (_H2,)),
        "w_mean": w(ks[4], (_H2, latent_dim)), "b_mean": b(ks[5], (latent_dim,)),
        "w_log_std": w(ks[6], (_H2, latent_dim)), "b_log_std": b(ks[7], (latent_dim,)),
        "w_d1": w(ks[8], (state_dim + latent_dim, _H2)), "b_d1": b(ks[9], (_H2,)),
        "w_d2": w(ks[10], (_H2, _H1)), "b_d2": b(ks[11], (_H1,)),
        "w_d3": w(ks[12], (_H1, action_dim)), "b_d3": b(ks[13], (action_dim,)),
    }


def pack_params(p, state_dim, action_dim, latent_dim):
    """Pack all layers into one bf16 weight slab + one f32 bias slab (host-side, once)."""
    S, A, L = state_dim, action_dim, latent_dim
    w_slab = jnp.zeros((_R_TOTAL, _C_TOTAL), jnp.bfloat16)
    b_slab = jnp.zeros((1, _C_TOTAL), jnp.float32)

    w_slab = w_slab.at[:S + A, _OFF_E1:_OFF_E1 + _H1].set(p["w_e1"])
    b_slab = b_slab.at[0, _OFF_E1:_OFF_E1 + _H1].set(p["b_e1"])

    w_slab = w_slab.at[:_H1, _OFF_E2:_OFF_E2 + _H2].set(p["w_e2"])
    b_slab = b_slab.at[0, _OFF_E2:_OFF_E2 + _H2].set(p["b_e2"])

    w_slab = w_slab.at[:_H2, _OFF_MS:_OFF_MS + L].set(p["w_mean"])
    w_slab = w_slab.at[:_H2, _OFF_MS + L:_OFF_MS + 2 * L].set(p["w_log_std"])
    b_slab = b_slab.at[0, _OFF_MS:_OFF_MS + L].set(p["b_mean"])
    b_slab = b_slab.at[0, _OFF_MS + L:_OFF_MS + 2 * L].set(p["b_log_std"])

    w_slab = w_slab.at[:S, _OFF_D1S:_OFF_D1S + _H2].set(p["w_d1"][:S])
    w_slab = w_slab.at[:L, _OFF_D1Z:_OFF_D1Z + _H2].set(p["w_d1"][S:])
    b_slab = b_slab.at[0, _OFF_D1S:_OFF_D1S + _H2].set(p["b_d1"])

    w_slab = w_slab.at[:_H2, _OFF_D2:_OFF_D2 + _H1].set(p["w_d2"])
    b_slab = b_slab.at[0, _OFF_D2:_OFF_D2 + _H1].set(p["b_d2"])

    w_slab = w_slab.at[:_H1, _OFF_D3:_OFF_D3 + A].set(p["w_d3"])
    b_slab = b_slab.at[0, _OFF_D3:_OFF_D3 + A].set(p["b_d3"])

    return {"w_slab": w_slab, "b_slab": b_slab}


def reference_forward(state, action, eps, p, max_action):
    """Pure-JAX reference in f32 (weights upcast from bf16)."""
    f = lambda x: x.astype(jnp.float32)
    relu = jax.nn.relu
    sa = jnp.concatenate([state, action], axis=1)
    h = relu(sa @ f(p["w_e1"]) + p["b_e1"])
    h = relu(h @ f(p["w_e2"]) + p["b_e2"])
    mean = h @ f(p["w_mean"]) + p["b_mean"]
    log_std = h @ f(p["w_log_std"]) + p["b_log_std"]
    std = jnp.exp(log_std)                 # unclamped, as in the PyTorch spec
    z = mean + std * eps
    d = relu(jnp.concatenate([state, z], axis=1) @ f(p["w_d1"]) + p["b_d1"])
    d = relu(d @ f(p["w_d2"]) + p["b_d2"])
    u = max_action * jnp.tanh(d @ f(p["w_d3"]) + p["b_d3"])
    return u, mean, std


if __name__ == "__main__":
    B = 8              # small demo batch (one grid step); production batches tile
    STATE_DIM = 32     # state_seq_dim
    ACTION_DIM = 16    # action_seq_dim
    LATENT_DIM = 8     # latent_dim
    MAX_ACTION = 1.0

    key = jax.random.PRNGKey(0)
    k_state, k_action, k_eps, k_params = jax.random.split(key, 4)

    state = jax.random.normal(k_state, (B, STATE_DIM), dtype=jnp.float32)
    action = jax.random.normal(k_action, (B, ACTION_DIM), dtype=jnp.float32)
    # torch.randn_like(std) equivalent, drawn host-side for determinism.
    eps = jax.random.normal(k_eps, (B, LATENT_DIM), dtype=jnp.float32)

    params = make_params(k_params, STATE_DIM, ACTION_DIM, LATENT_DIM)
    packed = pack_params(params, STATE_DIM, ACTION_DIM, LATENT_DIM)

    u, mean, std = residual_vae_forward(state, action, eps, packed, MAX_ACTION)
    jax.block_until_ready((u, mean, std))

    u_ref, mean_ref, std_ref = reference_forward(state, action, eps, params, MAX_ACTION)
    # bf16 MXU operands => compare against the f32 reference with a looser tolerance.
    assert jnp.allclose(u, u_ref, atol=3e-2, rtol=3e-2), "u mismatch"
    assert jnp.allclose(mean, mean_ref, atol=3e-2, rtol=3e-2), "mean mismatch"
    assert jnp.allclose(std, std_ref, atol=3e-2, rtol=3e-2), "std mismatch"

    print("KERNEL_OK")
</pallas_src>

<mosaic_0001>
module attributes {stable_mosaic.version = 11 : i64} {
  func.func @_residual_vae_kernel(%arg0: i32, %arg1: memref<16x128xbf16, #tpu.memory_space<vmem>>, %arg2: memref<16x128xf32, #tpu.memory_space<vmem>>, %arg3: memref<256x1152xbf16, #tpu.memory_space<vmem>>, %arg4: memref<1x1152xf32, #tpu.memory_space<vmem>>, %arg5: memref<16x128xf32, #tpu.memory_space<vmem>>) attributes {dimension_semantics = [#tpu.dimension_semantics<parallel>], iteration_bounds = array<i64: 1>, scalar_prefetch = 0 : i64, scratch_operands = 0 : i64, tpu.core_type = #tpu.core_type<tc>, window_params = [{transform_indices = @transform_0, window_bounds = array<i64: 16, 128>}, {transform_indices = @transform_1, window_bounds = array<i64: 16, 128>}, {pipeline_mode = #tpu.pipeline_mode<synchronous>, transform_indices = @transform_2, window_bounds = array<i64: 256, 1152>}, {pipeline_mode = #tpu.pipeline_mode<synchronous>, transform_indices = @transform_3, window_bounds = array<i64: 1, 1152>}, {transform_indices = @transform_4, window_bounds = array<i64: 16, 128>}]} {
    %c0 = arith.constant 0 : index
    %c0_0 = arith.constant 0 : index
    %0 = vector.load %arg1[%c0, %c0_0] : memref<16x128xbf16, #tpu.memory_space<vmem>>, vector<16x128xbf16>
    %c0_1 = arith.constant 0 : index
    %c0_2 = arith.constant 0 : index
    %1 = vector.load %arg3[%c0_1, %c0_2] : memref<256x1152xbf16, #tpu.memory_space<vmem>>, vector<128x256xbf16>
    %cst = arith.constant dense<0.000000e+00> : vector<16x256xf32>
    %2 = tpu.matmul %0, %1, %cst {dimension_numbers = #tpu.dot_dimension_numbers<[1], [0], [0], [1], [0, 0, 1, 1], [], []>} : vector<16x128xbf16>, vector<128x256xbf16>, vector<16x256xf32> -> vector<16x256xf32>
    %c0_3 = arith.constant 0 : index
    %c0_4 = arith.constant 0 : index
    %3 = vector.load %arg4[%c0_3, %c0_4] : memref<1x1152xf32, #tpu.memory_space<vmem>>, vector<1x256xf32>
    %4 = vector.broadcast %3 : vector<1x256xf32> to vector<16x256xf32>
    %5 = arith.addf %2, %4 : vector<16x256xf32>
    %cst_5 = arith.constant 0.000000e+00 : f32
    %6 = vector.broadcast %cst_5 : f32 to vector<16x256xf32>
    %7 = arith.maximumf %5, %6 : vector<16x256xf32>
    %8 = arith.truncf %7 : vector<16x256xf32> to vector<16x256xbf16>
    %c0_6 = arith.constant 0 : index
    %c256 = arith.constant 256 : index
    %9 = vector.load %arg3[%c0_6, %c256] : memref<256x1152xbf16, #tpu.memory_space<vmem>>, vector<256x128xbf16>
    %cst_7 = arith.constant dense<0.000000e+00> : vector<16x128xf32>
    %10 = tpu.matmul %8, %9, %cst_7 {dimension_numbers = #tpu.dot_dimension_numbers<[1], [0], [0], [1], [0, 0, 1, 1], [], []>} : vector<16x256xbf16>, vector<256x128xbf16>, vector<16x128xf32> -> vector<16x128xf32>
    %c0_8 = arith.constant 0 : index
    %c256_9 = arith.constant 256 : index
    %11 = vector.load %arg4[%c0_8, %c256_9] : memref<1x1152xf32, #tpu.memory_space<vmem>>, vector<1x128xf32>
    %12 = vector.broadcast %11 : vector<1x128xf32> to vector<16x128xf32>
    %13 = arith.addf %10, %12 : vector<16x128xf32>
    %cst_10 = arith.constant 0.000000e+00 : f32
    %14 = vector.broadcast %cst_10 : f32 to vector<16x128xf32>
    %15 = arith.maximumf %13, %14 : vector<16x128xf32>
    %16 = arith.truncf %15 : vector<16x128xf32> to vector<16x128xbf16>
    %c0_11 = arith.constant 0 : index
    %c384 = arith.constant 384 : index
    %17 = vector.load %arg3[%c0_11, %c384] : memref<256x1152xbf16, #tpu.memory_space<vmem>>, vector<128x128xbf16>
    %cst_12 = arith.constant dense<0.000000e+00> : vector<16x128xf32>
    %18 = tpu.matmul %16, %17, %cst_12 {dimension_numbers = #tpu.dot_dimension_numbers<[1], [0], [0], [1], [0, 0, 1, 1], [], []>} : vector<16x128xbf16>, vector<128x128xbf16>, vector<16x128xf32> -> vector<16x128xf32>
    %c0_13 = arith.constant 0 : index
    %c384_14 = arith.constant 384 : index
    %19 = vector.load %arg4[%c0_13, %c384_14] : memref<1x1152xf32, #tpu.memory_space<vmem>>, vector<1x128xf32>
    %20 = vector.broadcast %19 : vector<1x128xf32> to vector<16x128xf32>
    %21 = arith.addf %18, %20 : vector<16x128xf32>
    %22 = tpu.iota {dimensions = array<i32: 1>} : vector<16x128xi32>
    %c8_i32 = arith.constant 8 : i32
    %23 = vector.broadcast %c8_i32 : i32 to vector<16x128xi32>
    %24 = arith.cmpi sge, %22, %23 : vector<16x128xi32>
    %c16_i32 = arith.constant 16 : i32
    %25 = vector.broadcast %c16_i32 : i32 to vector<16x128xi32>
    %26 = arith.cmpi slt, %22, %25 : vector<16x128xi32>
    %27 = arith.andi %24, %26 : vector<16x128xi1>
    %28 = math.exp %21 : vector<16x128xf32>
    %29 = arith.select %27, %28, %21 : vector<16x128xi1>, vector<16x128xf32>
    %c120_i32 = arith.constant 120 : i32
    %30 = tpu.dynamic_rotate %29 by %c120_i32 dim 1 : vector<16x128xf32>, i32 -> vector<16x128xf32>
    %c0_15 = arith.constant 0 : index
    %c0_16 = arith.constant 0 : index
    %31 = vector.load %arg2[%c0_15, %c0_16] : memref<16x128xf32, #tpu.memory_space<vmem>>, vector<16x128xf32>
    %32 = arith.mulf %30, %31 : vector<16x128xf32>
    %33 = arith.addf %29, %32 : vector<16x128xf32>
    %c0_17 = arith.constant 0 : index
    %c512 = arith.constant 512 : index
    %34 = vector.load %arg3[%c0_17, %c512] : memref<256x1152xbf16, #tpu.memory_space<vmem>>, vector<128x128xbf16>
    %cst_18 = arith.constant dense<0.000000e+00> : vector<16x128xf32>
    %35 = tpu.matmul %0, %34, %cst_18 {dimension_numbers = #tpu.dot_dimension_numbers<[1], [0], [0], [1], [0, 0, 1, 1], [], []>} : vector<16x128xbf16>, vector<128x128xbf16>, vector<16x128xf32> -> vector<16x128xf32>
    %36 = arith.truncf %33 : vector<16x128xf32> to vector<16x128xbf16>
    %c0_19 = arith.constant 0 : index
    %c640 = arith.constant 640 : index
    %37 = vector.load %arg3[%c0_19, %c640] : memref<256x1152xbf16, #tpu.memory_space<vmem>>, vector<128x128xbf16>
    %cst_20 = arith.constant dense<0.000000e+00> : vector<16x128xf32>
    %38 = tpu.matmul %36, %37, %cst_20 {dimension_numbers = #tpu.dot_dimension_numbers<[1], [0], [0], [1], [0, 0, 1, 1], [], []>} : vector<16x128xbf16>, vector<128x128xbf16>, vector<16x128xf32> -> vector<16x128xf32>
    %39 = arith.addf %35, %38 : vector<16x128xf32>
    %c0_21 = arith.constant 0 : index
    %c512_22 = arith.constant 512 : index
    %40 = vector.load %arg4[%c0_21, %c512_22] : memref<1x1152xf32, #tpu.memory_space<vmem>>, vector<1x128xf32>
    %41 = vector.broadcast %40 : vector<1x128xf32> to vector<16x128xf32>
    %42 = arith.addf %39, %41 : vector<16x128xf32>
    %cst_23 = arith.constant 0.000000e+00 : f32
    %43 = vector.broadcast %cst_23 : f32 to vector<16x128xf32>
    %44 = arith.maximumf %42, %43 : vector<16x128xf32>
    %45 = arith.truncf %44 : vector<16x128xf32> to vector<16x128xbf16>
    %c0_24 = arith.constant 0 : index
    %c768 = arith.constant 768 : index
    %46 = vector.load %arg3[%c0_24, %c768] : memref<256x1152xbf16, #tpu.memory_space<vmem>>, vector<128x256xbf16>
    %cst_25 = arith.constant dense<0.000000e+00> : vector<16x256xf32>
    %47 = tpu.matmul %45, %46, %cst_25 {dimension_numbers = #tpu.dot_dimension_numbers<[1], [0], [0], [1], [0, 0, 1, 1], [], []>} : vector<16x128xbf16>, vector<128x256xbf16>, vector<16x256xf32> -> vector<16x256xf32>
    %c0_26 = arith.constant 0 : index
    %c768_27 = arith.constant 768 : index
    %48 = vector.load %arg4[%c0_26, %c768_27] : memref<1x1152xf32, #tpu.memory_space<vmem>>, vector<1x256xf32>
    %49 = vector.broadcast %48 : vector<1x256xf32> to vector<16x256xf32>
    %50 = arith.addf %47, %49 : vector<16x256xf32>
    %cst_28 = arith.constant 0.000000e+00 : f32
    %51 = vector.broadcast %cst_28 : f32 to vector<16x256xf32>
    %52 = arith.maximumf %50, %51 : vector<16x256xf32>
    %53 = arith.truncf %52 : vector<16x256xf32> to vector<16x256xbf16>
    %c0_29 = arith.constant 0 : index
    %c1024 = arith.constant 1024 : index
    %54 = vector.load %arg3[%c0_29, %c1024] : memref<256x1152xbf16, #tpu.memory_space<vmem>>, vector<256x128xbf16>
    %cst_30 = arith.constant dense<0.000000e+00> : vector<16x128xf32>
    %55 = tpu.matmul %53, %54, %cst_30 {dimension_numbers = #tpu.dot_dimension_numbers<[1], [0], [0], [1], [0, 0, 1, 1], [], []>} : vector<16x256xbf16>, vector<256x128xbf16>, vector<16x128xf32> -> vector<16x128xf32>
    %c0_31 = arith.constant 0 : index
    %c1024_32 = arith.constant 1024 : index
    %56 = vector.load %arg4[%c0_31, %c1024_32] : memref<1x1152xf32, #tpu.memory_space<vmem>>, vector<1x128xf32>
    %57 = vector.broadcast %56 : vector<1x128xf32> to vector<16x128xf32>
    %58 = arith.addf %55, %57 : vector<16x128xf32>
    %59 = math.tanh %58 : vector<16x128xf32>
    %cst_33 = arith.constant 1.000000e+00 : f32
    %60 = vector.broadcast %cst_33 : f32 to vector<16x128xf32>
    %61 = arith.mulf %60, %59 : vector<16x128xf32>
    %c16_i32_34 = arith.constant 16 : i32
    %62 = tpu.dynamic_rotate %29 by %c16_i32_34 dim 1 : vector<16x128xf32>, i32 -> vector<16x128xf32>
    %63 = arith.addf %61, %62 : vector<16x128xf32>
    %c0_35 = arith.constant 0 : index
    %c0_36 = arith.constant 0 : index
    %64 = vector.load %arg5[%c0_35, %c0_36] : memref<16x128xf32, #tpu.memory_space<vmem>>, vector<16x128xf32>
    tpu.vector_store %arg5[%c0_35, %c0_36], %63 {strides = array<i32>} : memref<16x128xf32, #tpu.memory_space<vmem>>, vector<16x128xf32>,
    return
  }
  func.func @transform_0(%arg0: i32) -> (i32, i32) {
    %c0_i32 = arith.constant 0 : i32
    %c0_i32_0 = arith.constant 0 : i32
    return %arg0, %c0_i32 : i32, i32
  }
  func.func @transform_1(%arg0: i32) -> (i32, i32) {
    %c0_i32 = arith.constant 0 : i32
    %c0_i32_0 = arith.constant 0 : i32
    return %arg0, %c0_i32 : i32, i32
  }
  func.func @transform_2(%arg0: i32) -> (i32, i32) {
    %c0_i32 = arith.constant 0 : i32
    %c0_i32_0 = arith.constant 0 : i32
    %c0_i32_1 = arith.constant 0 : i32
    return %c0_i32, %c0_i32_0 : i32, i32
  }
  func.func @transform_3(%arg0: i32) -> (i32, i32) {
    %c0_i32 = arith.constant 0 : i32
    %c0_i32_0 = arith.constant 0 : i32
    %c0_i32_1 = arith.constant 0 : i32
    return %c0_i32, %c0_i32_0 : i32, i32
  }
  func.func @transform_4(%arg0: i32) -> (i32, i32) {
    %c0_i32 = arith.constant 0 : i32
    %c0_i32_0 = arith.constant 0 : i32
    return %arg0, %c0_i32 : i32, i32
  }
}

</mosaic_0001>

<llo_original>
// kernel: tpu_custom_call.1
$region0: #{tpu_custom_call.1}
  #allocation0 [shape = 'u32[]', space=smem, size = 0x4, offset = 0x4, fixed_abs, tag = 'smem constant byte address 0x4 - core index']
  #allocation1 [shape = 'u32[72,128]{1,0:T(1,128)}', space=vmem, size = 0x9000, scoped, tag = 'internal scratch']
  %s0 = inlined_call_operand.hbm [shape: bf16[16,128], index: 0, kind: input, shape index: {}]
  %s1 = inlined_call_operand.hbm [shape: f32[16,128], index: 1, kind: input, shape index: {}]
  %s2 = inlined_call_operand.hbm [shape: bf16[256,1152], index: 2, kind: input, shape index: {}]
  %s3 = inlined_call_operand.hbm [shape: f32[1,1152], index: 3, kind: input, shape index: {}]
  %s4 = inlined_call_operand.hbm [shape: f32[16,128], index: 4, kind: output, shape index: {}]
  %s5 = sld [smem:[#allocation0]]
  $region42: #{tpu_custom_call.1} parent=0
    _
  %s7 = ssub.s32 1, %s5
  %s8 = scalar_select 0, %s7, %s5
  $region1: #{tpu_custom_call.1} parent=0
    #allocation2 [shape = 'u8[4096]{0}', space=vmem, size = 0x1000, scoped, tag = 'input window, operand 0, single buffered']
    #allocation3 [shape = 's32[1]{0}', space=sflag, size = 0x4, scoped, tag = 'scoped memory for tpu_custom_call.1']
    #allocation4 [shape = 's32[1]{0}', space=sflag, size = 0x4, scoped, tag = 'scoped memory for tpu_custom_call.1']
    #allocation5 [shape = 'u8[8192]{0}', space=vmem, size = 0x2000, scoped, tag = 'input window, operand 1, single buffered']
    #allocation6 [shape = 's32[1]{0}', space=sflag, size = 0x4, scoped, tag = 'scoped memory for tpu_custom_call.1']
    #allocation7 [shape = 'u8[589824]{0}', space=vmem, size = 0x90000, scoped, tag = 'input window, operand 2, single buffered']
    #allocation8 [shape = 'u8[4608]{0}', space=vmem, size = 0x1400, scoped, tag = 'input window, operand 3, single buffered']
    #allocation9 [shape = 's32[1]{0}', space=sflag, size = 0x4, scoped, tag = 'scoped memory for tpu_custom_call.1']
    #allocation10 [shape = 'u8[8192]{0}', space=vmem, size = 0x2000, scoped, tag = 'output window, operand 0, single buffered']
    %9 = vsyncpa [#allocation3], 0
    %10 = vsyncpa [#allocation6], 0
    %11 = vsyncpa [#allocation9], 0
    %12 = vsyncpa [#allocation4], 0
    // Predicated region
    $region2: #{tpu_custom_call.1} parent=1 // pred_check
      _
    $region3: #{tpu_custom_call.1} parent=1 // pred_check_branch
      %14 = sbr.rel (0) target = $region5
    $region4: #{tpu_custom_call.1} parent=1 // pred_region
      %16 = vsyncadd [#allocation3], 0
      %s17 = sshll.u32 %s0, 4
      %s18 = int_to_ptr.hbm [resolvable:$true] %s17
      %s19 = sshll.u32 [#allocation2], 4
      %s20 = int_to_ptr.vmem [resolvable:$true] %s19
      %25 = dma.hbm_to_vmem [thread:$0]  %s18, 128, %s20, [#allocation3], 64, 64, 4
    $region5: #{tpu_custom_call.1} parent=1 // pred_fallthru
      _
    // Predicated region
    $region6: #{tpu_custom_call.1} parent=1 // pred_check
      _
    $region7: #{tpu_custom_call.1} parent=1 // pred_check_branch
      %27 = sbr.rel (0) target = $region9
    $region8: #{tpu_custom_call.1} parent=1 // pred_region
      %29 = vsyncadd [#allocation6], 0
      %s30 = sshll.u32 %s1, 4
      %s31 = int_to_ptr.hbm [resolvable:$true] %s30
      %s32 = sshll.u32 [#allocation5], 4
      %s33 = int_to_ptr.vmem [resolvable:$true] %s32
      %38 = dma.hbm_to_vmem [thread:$0]  %s31, 256, %s33, [#allocation6], 128, 128, 8
    $region9: #{tpu_custom_call.1} parent=1 // pred_fallthru
      _
    // Predicated region
    $region10: #{tpu_custom_call.1} parent=1 // pred_check
      _
    $region11: #{tpu_custom_call.1} parent=1 // pred_check_branch
      %40 = sbr.rel (0) target = $region13
    $region12: #{tpu_custom_call.1} parent=1 // pred_region
      %42 = vsyncadd [#allocation6], 0
      %s43 = sshll.u32 %s2, 4
      %s44 = int_to_ptr.hbm [resolvable:$true] %s43
      %s45 = sshll.u32 [#allocation7], 4
      %s46 = int_to_ptr.vmem [resolvable:$true] %s45
      %51 = dma.hbm_to_vmem [thread:$0]  %s44, 18432, %s46, [#allocation6], 576, 576, 36
    $region13: #{tpu_custom_call.1} parent=1 // pred_fallthru
      _
    // Predicated region
    $region14: #{tpu_custom_call.1} parent=1 // pred_check
      _
    $region15: #{tpu_custom_call.1} parent=1 // pred_check_branch
      %53 = sbr.rel (0) target = $region17
    $region16: #{tpu_custom_call.1} parent=1 // pred_region
      %55 = vsyncadd [#allocation9], 0
      %s57 = sshll.u32 %s3, 4
      %s58 = int_to_ptr.hbm [resolvable:$true] %s57
      %s59 = sshll.u32 [#allocation8], 4
      %s60 = int_to_ptr.vmem [resolvable:$true] %s59
      %62 = dma.hbm_to_vmem [thread:$0]  %s58, 144, %s60, [#allocation9]
    $region17: #{tpu_custom_call.1} parent=1 // pred_fallthru
      _
    // Predicated region
    $region18: #{tpu_custom_call.1} parent=1 // pred_check
      _
    $region19: #{tpu_custom_call.1} parent=1 // pred_check_branch
      %64 = sbr.rel (0) target = $region21
    $region20: #{tpu_custom_call.1} parent=1 // pred_region
      %66 = dma.done [#allocation3], 128
    $region21: #{tpu_custom_call.1} parent=1 // pred_fallthru
      _
    // Predicated region
    $region22: #{tpu_custom_call.1} parent=1 // pred_check
      _
    $region23: #{tpu_custom_call.1} parent=1 // pred_check_branch
      %68 = sbr.rel (0) target = $region25
    $region24: #{tpu_custom_call.1} parent=1 // pred_region
      %70 = dma.done [#allocation6], 256
    $region25: #{tpu_custom_call.1} parent=1 // pred_fallthru
      _
    // Predicated region
    $region26: #{tpu_custom_call.1} parent=1 // pred_check
      _
    $region27: #{tpu_custom_call.1} parent=1 // pred_check_branch
      %72 = sbr.rel (0) target = $region29
    $region28: #{tpu_custom_call.1} parent=1 // pred_region
      %74 = dma.done [#allocation6], 18432
    $region29: #{tpu_custom_call.1} parent=1 // pred_fallthru
      _
    // Predicated region
    $region30: #{tpu_custom_call.1} parent=1 // pred_check
      _
    $region31: #{tpu_custom_call.1} parent=1 // pred_check_branch
      %76 = sbr.rel (0) target = $region33
    $region32: #{tpu_custom_call.1} parent=1 // pred_region
      %78 = dma.done [#allocation9], 144
    $region33: #{tpu_custom_call.1} parent=1 // pred_fallthru
      _
    %v79 = vld [vmem:[#allocation2] sm:$0xf]
    %v80 = vld [vmem:[#allocation2 + $0x4] sm:$0xf]
    %v81 = vld [vmem:[#allocation7] sm:$0xff]
    %v82 = vld [vmem:[#allocation7 + $0x24] sm:$0xff]
    %v83 = vld [vmem:[#allocation7 + $0x48] sm:$0xff]
    %v84 = vld [vmem:[#allocation7 + $0x6c] sm:$0xff]
    %v85 = vld [vmem:[#allocation7 + $0x90] sm:$0xff]
    %v86 = vld [vmem:[#allocation7 + $0xb4] sm:$0xff]
    %v87 = vld [vmem:[#allocation7 + $0xd8] sm:$0xff]
    %v88 = vld [vmem:[#allocation7 + $0xfc] sm:$0xff]
    %v89 = vld [vmem:[#allocation7 + $0x120] sm:$0xff]
    %v90 = vld [vmem:[#allocation7 + $0x144] sm:$0xff]
    %v91 = vld [vmem:[#allocation7 + $0x168] sm:$0xff]
    %v92 = vld [vmem:[#allocation7 + $0x18c] sm:$0xff]
    %v93 = vld [vmem:[#allocation7 + $0x1b0] sm:$0xff]
    %v94 = vld [vmem:[#allocation7 + $0x1d4] sm:$0xff]
    %v95 = vld [vmem:[#allocation7 + $0x1f8] sm:$0xff]
    %v96 = vld [vmem:[#allocation7 + $0x21c] sm:$0xff]
    %v97 = vld [vmem:[#allocation8] sm:$0x3]
    %v99 = vperm.slane %v97, 0
    %v100 = vperm.slane %v97, 1
    %v105 = vunpack.c.l.b16 %v79
    %v106 = vunpack.c.l.b16 %v80
    %v107 = vpack.c.b16 %v106, %v105
    %v125 = vunpack.c.l.b16 %v81
    %v126 = vunpack.c.h.b16 %v81
    %v127 = vunpack.c.l.b16 %v82
    %v128 = vunpack.c.h.b16 %v82
    %v129 = vunpack.c.l.b16 %v83
    %v130 = vunpack.c.h.b16 %v83
    %v131 = vunpack.c.l.b16 %v84
    %v132 = vunpack.c.h.b16 %v84
    %v133 = vunpack.c.l.b16 %v85
    %v134 = vunpack.c.h.b16 %v85
    %v135 = vunpack.c.l.b16 %v86
    %v136 = vunpack.c.h.b16 %v86
    %v137 = vunpack.c.l.b16 %v87
    %v138 = vunpack.c.h.b16 %v87
    %v139 = vunpack.c.l.b16 %v88
    %v140 = vunpack.c.h.b16 %v88
    %v141 = vunpack.c.l.b16 %v89
    %v142 = vunpack.c.h.b16 %v89
    %v143 = vunpack.c.l.b16 %v90
    %v144 = vunpack.c.h.b16 %v90
    %v145 = vunpack.c.l.b16 %v91
    %v146 = vunpack.c.h.b16 %v91
    %v147 = vunpack.c.l.b16 %v92
    %v148 = vunpack.c.h.b16 %v92
    %v149 = vunpack.c.l.b16 %v93
    %v150 = vunpack.c.h.b16 %v93
    %v151 = vunpack.c.l.b16 %v94
    %v152 = vunpack.c.h.b16 %v94
    %v153 = vunpack.c.l.b16 %v95
    %v154 = vunpack.c.h.b16 %v95
    %v155 = vunpack.c.l.b16 %v96
    %v156 = vunpack.c.h.b16 %v96
    %v157 = vpack.c.b16 %v127, %v125
    %v158 = vpack.c.b16 %v128, %v126
    %v159 = vpack.c.b16 %v131, %v129
    %v160 = vpack.c.b16 %v132, %v130
    %v161 = vpack.c.b16 %v135, %v133
    %v162 = vpack.c.b16 %v136, %v134
    %v163 = vpack.c.b16 %v139, %v137
    %v164 = vpack.c.b16 %v140, %v138
    %v165 = vpack.c.b16 %v143, %v141
    %v166 = vpack.c.b16 %v144, %v142
    %v167 = vpack.c.b16 %v147, %v145
    %v168 = vpack.c.b16 %v148, %v146
    %v169 = vpack.c.b16 %v151, %v149
    %v170 = vpack.c.b16 %v152, %v150
    %v171 = vpack.c.b16 %v155, %v153
    %v172 = vpack.c.b16 %v156, %v154
    %189 = vmatpush.bf16.msra.mxu0 %v171
    %190 = vmatpush.bf16.msra.mxu0 %v169
    %191 = vmatpush.bf16.msra.mxu0 %v167
    %192 = vmatpush.bf16.msra.mxu0 %v165
    %193 = vmatpush.bf16.msra.mxu0 %v163
    %194 = vmatpush.bf16.msra.mxu0 %v161
    %195 = vmatpush.bf16.msra.mxu0 %v159
    %196 = vmatpush.bf16.msra.mxu0 %v157
    %197 = vmatmul.bf16.gmra.mxu0 %v107
    %v198 = vpop.f32.mrf.mxu0
    %v199 = vadd.f32 %v99, %v198
    %v200 = vpop.f32.mrf.mxu0
    %v201 = vadd.f32 %v99, %v200
    %202 = vdwg.mxu0
    %203 = vmatpush.bf16.msra.mxu0 %v172
    %204 = vmatpush.bf16.msra.mxu0 %v170
    %205 = vmatpush.bf16.msra.mxu0 %v168
    %206 = vmatpush.bf16.msra.mxu0 %v166
    %207 = vmatpush.bf16.msra.mxu0 %v164
    %208 = vmatpush.bf16.msra.mxu0 %v162
    %209 = vmatpush.bf16.msra.mxu0 %v160
    %210 = vmatpush.bf16.msra.mxu0 %v158
    %211 = vmatmul.bf16.gmra.mxu0 %v107
    %v212 = vpop.f32.mrf.mxu0
    %v213 = vadd.f32 %v100, %v212
    %v214 = vpop.f32.mrf.mxu0
    %v215 = vadd.f32 %v100, %v214
    %216 = vdwg.mxu0
    %v217 = vmax.f32 %v199, 0.0
    %v218 = vmax.f32 %v213, 0.0
    %v219 = vmax.f32 %v201, 0.0
    %v220 = vmax.f32 %v215, 0.0
    %v221 = vpack.c.bf16 %v219, %v217
    %v222 = vpack.c.bf16 %v220, %v218
    %v223 = vld [vmem:[#allocation7 + $0x8] sm:$0xf]
    %v224 = vld [vmem:[#allocation7 + $0x2c] sm:$0xf]
    %v225 = vld [vmem:[#allocation7 + $0x50] sm:$0xf]
    %v226 = vld [vmem:[#allocation7 + $0x74] sm:$0xf]
    %v227 = vld [vmem:[#allocation7 + $0x98] sm:$0xf]
    %v228 = vld [vmem:[#allocation7 + $0xbc] sm:$0xf]
    %v229 = vld [vmem:[#allocation7 + $0xe0] sm:$0xf]
    %v230 = vld [vmem:[#allocation7 + $0x104] sm:$0xf]
    %v231 = vld [vmem:[#allocation7 + $0x128] sm:$0xf]
    %v232 = vld [vmem:[#allocation7 + $0x14c] sm:$0xf]
    %v233 = vld [vmem:[#allocation7 + $0x170] sm:$0xf]
    %v234 = vld [vmem:[#allocation7 + $0x194] sm:$0xf]
    %v235 = vld [vmem:[#allocation7 + $0x1b8] sm:$0xf]
    %v236 = vld [vmem:[#allocation7 + $0x1dc] sm:$0xf]
    %v237 = vld [vmem:[#allocation7 + $0x200] sm:$0xf]
    %v238 = vld [vmem:[#allocation7 + $0x224] sm:$0xf]
    %v239 = vld [vmem:[#allocation7 + $0x248] sm:$0xf]
    %v240 = vld [vmem:[#allocation7 + $0x26c] sm:$0xf]
    %v241 = vld [vmem:[#allocation7 + $0x290] sm:$0xf]
    %v242 = vld [vmem:[#allocation7 + $0x2b4] sm:$0xf]
    %v243 = vld [vmem:[#allocation7 + $0x2d8] sm:$0xf]
    %v244 = vld [vmem:[#allocation7 + $0x2fc] sm:$0xf]
    %v245 = vld [vmem:[#allocation7 + $0x320] sm:$0xf]
    %v246 = vld [vmem:[#allocation7 + $0x344] sm:$0xf]
    %v247 = vld [vmem:[#allocation7 + $0x368] sm:$0xf]
    %v248 = vld [vmem:[#allocation7 + $0x38c] sm:$0xf]
    %v249 = vld [vmem:[#allocation7 + $0x3b0] sm:$0xf]
    %v250 = vld [vmem:[#allocation7 + $0x3d4] sm:$0xf]
    %v251 = vld [vmem:[#allocation7 + $0x3f8] sm:$0xf]
    %v252 = vld [vmem:[#allocation7 + $0x41c] sm:$0xf]
    %v253 = vld [vmem:[#allocation7 + $0x440] sm:$0xf]
    %v254 = vld [vmem:[#allocation7 + $0x464] sm:$0xf]
    %v255 = vld [vmem:[#allocation8 + $0x2] sm:$0x1]
    %v257 = vperm.slane %v255, 0
    %v291 = vunpack.c.l.b16 %v223
    %v292 = vunpack.c.l.b16 %v224
    %v293 = vunpack.c.l.b16 %v225
    %v294 = vunpack.c.l.b16 %v226
    %v295 = vunpack.c.l.b16 %v227
    %v296 = vunpack.c.l.b16 %v228
    %v297 = vunpack.c.l.b16 %v229
    %v298 = vunpack.c.l.b16 %v230
    %v299 = vunpack.c.l.b16 %v231
    %v300 = vunpack.c.l.b16 %v232
    %v301 = vunpack.c.l.b16 %v233
    %v302 = vunpack.c.l.b16 %v234
    %v303 = vunpack.c.l.b16 %v235
    %v304 = vunpack.c.l.b16 %v236
    %v305 = vunpack.c.l.b16 %v237
    %v306 = vunpack.c.l.b16 %v238
    %v307 = vunpack.c.l.b16 %v239
    %v308 = vunpack.c.l.b16 %v240
    %v309 = vunpack.c.l.b16 %v241
    %v310 = vunpack.c.l.b16 %v242
    %v311 = vunpack.c.l.b16 %v243
    %v312 = vunpack.c.l.b16 %v244
    %v313 = vunpack.c.l.b16 %v245
    %v314 = vunpack.c.l.b16 %v246
    %v315 = vunpack.c.l.b16 %v247
    %v316 = vunpack.c.l.b16 %v248
    %v317 = vunpack.c.l.b16 %v249
    %v318 = vunpack.c.l.b16 %v250
    %v319 = vunpack.c.l.b16 %v251
    %v320 = vunpack.c.l.b16 %v252
    %v321 = vunpack.c.l.b16 %v253
    %v322 = vunpack.c.l.b16 %v254
    %v323 = vpack.c.b16 %v292, %v291
    %v324 = vpack.c.b16 %v294, %v293
    %v325 = vpack.c.b16 %v296, %v295
    %v326 = vpack.c.b16 %v298, %v297
    %v327 = vpack.c.b16 %v300, %v299
    %v328 = vpack.c.b16 %v302, %v301
    %v329 = vpack.c.b16 %v304, %v303
    %v330 = vpack.c.b16 %v306, %v305
    %v331 = vpack.c.b16 %v308, %v307
    %v332 = vpack.c.b16 %v310, %v309
    %v333 = vpack.c.b16 %v312, %v311
    %v334 = vpack.c.b16 %v314, %v313
    %v335 = vpack.c.b16 %v316, %v315
    %v336 = vpack.c.b16 %v318, %v317
    %v337 = vpack.c.b16 %v320, %v319
    %v338 = vpack.c.b16 %v322, %v321
    %355 = vmatpush.bf16.msra.mxu0 %v330
    %356 = vmatpush.bf16.msra.mxu0 %v329
    %357 = vmatpush.bf16.msra.mxu0 %v328
    %358 = vmatpush.bf16.msra.mxu0 %v327
    %359 = vmatpush.bf16.msra.mxu0 %v326
    %360 = vmatpush.bf16.msra.mxu0 %v325
    %361 = vmatpush.bf16.msra.mxu0 %v324
    %362 = vmatpush.bf16.msra.mxu0 %v323
    %363 = vmatmul.bf16.gmra.mxu0 %v221
    %v364 = vpop.f32.mrf.mxu0
    %v365 = vadd.f32 %v257, %v364
    %v366 = vpop.f32.mrf.mxu0
    %v367 = vadd.f32 %v257, %v366
    %368 = vdwg.mxu0
    %369 = vmatpush.bf16.msra.mxu0 %v338
    %370 = vmatpush.bf16.msra.mxu0 %v337
    %371 = vmatpush.bf16.msra.mxu0 %v336
    %372 = vmatpush.bf16.msra.mxu0 %v335
    %373 = vmatpush.bf16.msra.mxu0 %v334
    %374 = vmatpush.bf16.msra.mxu0 %v333
    %375 = vmatpush.bf16.msra.mxu0 %v332
    %376 = vmatpush.bf16.msra.mxu0 %v331
    %377 = vmatmul.bf16.gmra.mxu0 %v222
    %v378 = vpop.f32.mrf.mxu0
    %v379 = vadd.f32 %v365, %v378
    %v380 = vpop.f32.mrf.mxu0
    %v381 = vadd.f32 %v367, %v380
    %382 = vdwg.mxu0
    %v383 = vmax.f32 %v379, 0.0
    %v384 = vmax.f32 %v381, 0.0
    %v385 = vpack.c.bf16 %v384, %v383
    %v386 = vld [vmem:[#allocation7 + $0xc] sm:$0xf]
    %v387 = vld [vmem:[#allocation7 + $0x30] sm:$0xf]
    %v388 = vld [vmem:[#allocation7 + $0x54] sm:$0xf]
    %v389 = vld [vmem:[#allocation7 + $0x78] sm:$0xf]
    %v390 = vld [vmem:[#allocation7 + $0x9c] sm:$0xf]
    %v391 = vld [vmem:[#allocation7 + $0xc0] sm:$0xf]
    %v392 = vld [vmem:[#allocation7 + $0xe4] sm:$0xf]
    %v393 = vld [vmem:[#allocation7 + $0x108] sm:$0xf]
    %v394 = vld [vmem:[#allocation7 + $0x12c] sm:$0xf]
    %v395 = vld [vmem:[#allocation7 + $0x150] sm:$0xf]
    %v396 = vld [vmem:[#allocation7 + $0x174] sm:$0xf]
    %v397 = vld [vmem:[#allocation7 + $0x198] sm:$0xf]
    %v398 = vld [vmem:[#allocation7 + $0x1bc] sm:$0xf]
    %v399 = vld [vmem:[#allocation7 + $0x1e0] sm:$0xf]
    %v400 = vld [vmem:[#allocation7 + $0x204] sm:$0xf]
    %v401 = vld [vmem:[#allocation7 + $0x228] sm:$0xf]
    %v402 = vld [vmem:[#allocation8 + $0x3] sm:$0x1]
    %v404 = vperm.slane %v402, 0
    %v422 = vunpack.c.l.b16 %v386
    %v423 = vunpack.c.l.b16 %v387
    %v424 = vunpack.c.l.b16 %v388
    %v425 = vunpack.c.l.b16 %v389
    %v426 = vunpack.c.l.b16 %v390
    %v427 = vunpack.c.l.b16 %v391
    %v428 = vunpack.c.l.b16 %v392
    %v429 = vunpack.c.l.b16 %v393
    %v430 = vunpack.c.l.b16 %v394
    %v431 = vunpack.c.l.b16 %v395
    %v432 = vunpack.c.l.b16 %v396
    %v433 = vunpack.c.l.b16 %v397
    %v434 = vunpack.c.l.b16 %v398
    %v435 = vunpack.c.l.b16 %v399
    %v436 = vunpack.c.l.b16 %v400
    %v437 = vunpack.c.l.b16 %v401
    %v438 = vpack.c.b16 %v423, %v422
    %v439 = vpack.c.b16 %v425, %v424
    %v440 = vpack.c.b16 %v427, %v426
    %v441 = vpack.c.b16 %v429, %v428
    %v442 = vpack.c.b16 %v431, %v430
    %v443 = vpack.c.b16 %v433, %v432
    %v444 = vpack.c.b16 %v435, %v434
    %v445 = vpack.c.b16 %v437, %v436
    %454 = vmatpush.bf16.msra.mxu0 %v445
    %455 = vmatpush.bf16.msra.mxu0 %v444
    %456 = vmatpush.bf16.msra.mxu0 %v443
    %457 = vmatpush.bf16.msra.mxu0 %v442
    %458 = vmatpush.bf16.msra.mxu0 %v441
    %459 = vmatpush.bf16.msra.mxu0 %v440
    %460 = vmatpush.bf16.msra.mxu0 %v439
    %461 = vmatpush.bf16.msra.mxu0 %v438
    %462 = vmatmul.bf16.gmra.mxu0 %v385
    %v463 = vpop.f32.mrf.mxu0
    %v464 = vadd.f32 %v404, %v463
    %v465 = vpop.f32.mrf.mxu0
    %v466 = vadd.f32 %v404, %v465
    %467 = vdwg.mxu0
    %v468 = vlaneseq
    %v469 = vand.u32 %v468, 127
    %vm470 = vcmp.ge.s32.totalorder %v469, 8
    %vm471 = vcmp.lt.s32.totalorder %v469, 16
    %vm472 = vmand %vm470, %vm471
    %v473 = vmul.f32 %v464, 1.442695
    %v474 = vpow.pop %v473
    %v475 = vmul.f32 %v466, 1.442695
    %v476 = vpow.pop %v475
    %v477 = vsel %vm472, %v474, %v464
    %v478 = vsel %vm472, %v476, %v466
    %479 = vrot.lane.b32.xlu0 %v477, 120
    %v480 = vpop.permute.xlu0 %479
    %481 = vrot.lane.b32.xlu0 %v478, 120
    %v482 = vpop.permute.xlu0 %481
    %v483 = vld [vmem:[#allocation5] sm:$0xff]
    %v484 = vld [vmem:[#allocation5 + $0x8] sm:$0xff]
    %v485 = vmul.f32 %v480, %v483
    %v486 = vmul.f32 %v482, %v484
    %v487 = vadd.f32 %v477, %v485
    %v488 = vadd.f32 %v478, %v486
    %v489 = vld [vmem:[#allocation7 + $0x10] sm:$0xf]
    %v490 = vld [vmem:[#allocation7 + $0x34] sm:$0xf]
    %v491 = vld [vmem:[#allocation7 + $0x58] sm:$0xf]
    %v492 = vld [vmem:[#allocation7 + $0x7c] sm:$0xf]
    %v493 = vld [vmem:[#allocation7 + $0xa0] sm:$0xf]
    %v494 = vld [vmem:[#allocation7 + $0xc4] sm:$0xf]
    %v495 = vld [vmem:[#allocation7 + $0xe8] sm:$0xf]
    %v496 = vld [vmem:[#allocation7 + $0x10c] sm:$0xf]
    %v497 = vld [vmem:[#allocation7 + $0x130] sm:$0xf]
    %v498 = vld [vmem:[#allocation7 + $0x154] sm:$0xf]
    %v499 = vld [vmem:[#allocation7 + $0x178] sm:$0xf]
    %v500 = vld [vmem:[#allocation7 + $0x19c] sm:$0xf]
    %v501 = vld [vmem:[#allocation7 + $0x1c0] sm:$0xf]
    %v502 = vld [vmem:[#allocation7 + $0x1e4] sm:$0xf]
    %v503 = vld [vmem:[#allocation7 + $0x208] sm:$0xf]
    %v504 = vld [vmem:[#allocation7 + $0x22c] sm:$0xf]
    %v505 = vpack.c.bf16 %v488, %v487
    %v506 = vld [vmem:[#allocation7 + $0x14] sm:$0xf]
    %v507 = vld [vmem:[#allocation7 + $0x38] sm:$0xf]
    %v508 = vld [vmem:[#allocation7 + $0x5c] sm:$0xf]
    %v509 = vld [vmem:[#allocation7 + $0x80] sm:$0xf]
    %v510 = vld [vmem:[#allocation7 + $0xa4] sm:$0xf]
    %v511 = vld [vmem:[#allocation7 + $0xc8] sm:$0xf]
    %v512 = vld [vmem:[#allocation7 + $0xec] sm:$0xf]
    %v513 = vld [vmem:[#allocation7 + $0x110] sm:$0xf]
    %v514 = vld [vmem:[#allocation7 + $0x134] sm:$0xf]
    %v515 = vld [vmem:[#allocation7 + $0x158] sm:$0xf]
    %v516 = vld [vmem:[#allocation7 + $0x17c] sm:$0xf]
    %v517 = vld [vmem:[#allocation7 + $0x1a0] sm:$0xf]
    %v518 = vld [vmem:[#allocation7 + $0x1c4] sm:$0xf]
    %v519 = vld [vmem:[#allocation7 + $0x1e8] sm:$0xf]
    %v520 = vld [vmem:[#allocation7 + $0x20c] sm:$0xf]
    %v521 = vld [vmem:[#allocation7 + $0x230] sm:$0xf]
    %v538 = vunpack.c.l.b16 %v506
    %v539 = vunpack.c.l.b16 %v507
    %v540 = vunpack.c.l.b16 %v508
    %v541 = vunpack.c.l.b16 %v509
    %v542 = vunpack.c.l.b16 %v510
    %v543 = vunpack.c.l.b16 %v511
    %v544 = vunpack.c.l.b16 %v512
    %v545 = vunpack.c.l.b16 %v513
    %v546 = vunpack.c.l.b16 %v514
    %v547 = vunpack.c.l.b16 %v515
    %v548 = vunpack.c.l.b16 %v516
    %v549 = vunpack.c.l.b16 %v517
    %v550 = vunpack.c.l.b16 %v518
    %v551 = vunpack.c.l.b16 %v519
    %v552 = vunpack.c.l.b16 %v520
    %v553 = vunpack.c.l.b16 %v521
    %v554 = vpack.c.b16 %v539, %v538
    %v555 = vpack.c.b16 %v541, %v540
    %v556 = vpack.c.b16 %v543, %v542
    %v557 = vpack.c.b16 %v545, %v544
    %v558 = vpack.c.b16 %v547, %v546
    %v559 = vpack.c.b16 %v549, %v548
    %v560 = vpack.c.b16 %v551, %v550
    %v561 = vpack.c.b16 %v553, %v552
    %570 = vmatpush.bf16.msra.mxu0 %v561
    %571 = vmatpush.bf16.msra.mxu0 %v560
    %572 = vmatpush.bf16.msra.mxu0 %v559
    %573 = vmatpush.bf16.msra.mxu0 %v558
    %574 = vmatpush.bf16.msra.mxu0 %v557
    %575 = vmatpush.bf16.msra.mxu0 %v556
    %576 = vmatpush.bf16.msra.mxu0 %v555
    %577 = vmatpush.bf16.msra.mxu0 %v554
    %578 = vmatmul.bf16.gmra.mxu0 %v505
    %v579 = vpop.f32.mrf.mxu0
    %v580 = vadd.f32 0.0, %v579
    %v581 = vpop.f32.mrf.mxu0
    %v582 = vadd.f32 0.0, %v581
    %583 = vdwg.mxu0
    %v600 = vunpack.c.l.b16 %v489
    %v601 = vunpack.c.l.b16 %v490
    %v602 = vunpack.c.l.b16 %v491
    %v603 = vunpack.c.l.b16 %v492
    %v604 = vunpack.c.l.b16 %v493
    %v605 = vunpack.c.l.b16 %v494
    %v606 = vunpack.c.l.b16 %v495
    %v607 = vunpack.c.l.b16 %v496
    %v608 = vunpack.c.l.b16 %v497
    %v609 = vunpack.c.l.b16 %v498
    %v610 = vunpack.c.l.b16 %v499
    %v611 = vunpack.c.l.b16 %v500
    %v612 = vunpack.c.l.b16 %v501
    %v613 = vunpack.c.l.b16 %v502
    %v614 = vunpack.c.l.b16 %v503
    %v615 = vunpack.c.l.b16 %v504
    %v616 = vpack.c.b16 %v601, %v600
    %v617 = vpack.c.b16 %v603, %v602
    %v618 = vpack.c.b16 %v605, %v604
    %v619 = vpack.c.b16 %v607, %v606
    %v620 = vpack.c.b16 %v609, %v608
    %v621 = vpack.c.b16 %v611, %v610
    %v622 = vpack.c.b16 %v613, %v612
    %v623 = vpack.c.b16 %v615, %v614
    %632 = vmatpush.bf16.msra.mxu0 %v623
    %633 = vmatpush.bf16.msra.mxu0 %v622
    %634 = vmatpush.bf16.msra.mxu0 %v621
    %635 = vmatpush.bf16.msra.mxu0 %v620
    %636 = vmatpush.bf16.msra.mxu0 %v619
    %637 = vmatpush.bf16.msra.mxu0 %v618
    %638 = vmatpush.bf16.msra.mxu0 %v617
    %639 = vmatpush.bf16.msra.mxu0 %v616
    %640 = vmatmul.bf16.gmra.mxu0 %v107
    %v641 = vpop.f32.mrf.mxu0
    %v642 = vadd.f32 %v580, %v641
    %v643 = vpop.f32.mrf.mxu0
    %v644 = vadd.f32 %v582, %v643
    %645 = vdwg.mxu0
    %v646 = vld [vmem:[#allocation8 + $0x4] sm:$0x1]
    %v648 = vperm.slane %v646, 0
    %v650 = vadd.f32 %v642, %v648
    %v651 = vadd.f32 %v644, %v648
    %v652 = vmax.f32 %v650, 0.0
    %v653 = vmax.f32 %v651, 0.0
    %v654 = vpack.c.bf16 %v653, %v652
    %v655 = vld [vmem:[#allocation7 + $0x18] sm:$0xff]
    %v656 = vld [vmem:[#allocation7 + $0x3c] sm:$0xff]
    %v657 = vld [vmem:[#allocation7 + $0x60] sm:$0xff]
    %v658 = vld [vmem:[#allocation7 + $0x84] sm:$0xff]
    %v659 = vld [vmem:[#allocation7 + $0xa8] sm:$0xff]
    %v660 = vld [vmem:[#allocation7 + $0xcc] sm:$0xff]
    %v661 = vld [vmem:[#allocation7 + $0xf0] sm:$0xff]
    %v662 = vld [vmem:[#allocation7 + $0x114] sm:$0xff]
    %v663 = vld [vmem:[#allocation7 + $0x138] sm:$0xff]
    %v664 = vld [vmem:[#allocation7 + $0x15c] sm:$0xff]
    %v665 = vld [vmem:[#allocation7 + $0x180] sm:$0xff]
    %v666 = vld [vmem:[#allocation7 + $0x1a4] sm:$0xff]
    %v667 = vld [vmem:[#allocation7 + $0x1c8] sm:$0xff]
    %v668 = vld [vmem:[#allocation7 + $0x1ec] sm:$0xff]
    %v669 = vld [vmem:[#allocation7 + $0x210] sm:$0xff]
    %v670 = vld [vmem:[#allocation7 + $0x234] sm:$0xff]
    %v671 = vld [vmem:[#allocation8 + $0x6] sm:$0x3]
    %v673 = vperm.slane %v671, 0
    %v674 = vperm.slane %v671, 1
    %v693 = vunpack.c.l.b16 %v655
    %v694 = vunpack.c.h.b16 %v655
    %v695 = vunpack.c.l.b16 %v656
    %v696 = vunpack.c.h.b16 %v656
    %v697 = vunpack.c.l.b16 %v657
    %v698 = vunpack.c.h.b16 %v657
    %v699 = vunpack.c.l.b16 %v658
    %v700 = vunpack.c.h.b16 %v658
    %v701 = vunpack.c.l.b16 %v659
    %v702 = vunpack.c.h.b16 %v659
    %v703 = vunpack.c.l.b16 %v660
    %v704 = vunpack.c.h.b16 %v660
    %v705 = vunpack.c.l.b16 %v661
    %v706 = vunpack.c.h.b16 %v661
    %v707 = vunpack.c.l.b16 %v662
    %v708 = vunpack.c.h.b16 %v662
    %v709 = vunpack.c.l.b16 %v663
    %v710 = vunpack.c.h.b16 %v663
    %v711 = vunpack.c.l.b16 %v664
    %v712 = vunpack.c.h.b16 %v664
    %v713 = vunpack.c.l.b16 %v665
    %v714 = vunpack.c.h.b16 %v665
    %v715 = vunpack.c.l.b16 %v666
    %v716 = vunpack.c.h.b16 %v666
    %v717 = vunpack.c.l.b16 %v667
    %v718 = vunpack.c.h.b16 %v667
    %v719 = vunpack.c.l.b16 %v668
    %v720 = vunpack.c.h.b16 %v668
    %v721 = vunpack.c.l.b16 %v669
    %v722 = vunpack.c.h.b16 %v669
    %v723 = vunpack.c.l.b16 %v670
    %v724 = vunpack.c.h.b16 %v670
    %v725 = vpack.c.b16 %v695, %v693
    %v726 = vpack.c.b16 %v696, %v694
    %v727 = vpack.c.b16 %v699, %v697
    %v728 = vpack.c.b16 %v700, %v698
    %v729 = vpack.c.b16 %v703, %v701
    %v730 = vpack.c.b16 %v704, %v702
    %v731 = vpack.c.b16 %v707, %v705
    %v732 = vpack.c.b16 %v708, %v706
    %v733 = vpack.c.b16 %v711, %v709
    %v734 = vpack.c.b16 %v712, %v710
    %v735 = vpack.c.b16 %v715, %v713
    %v736 = vpack.c.b16 %v716, %v714
    %v737 = vpack.c.b16 %v719, %v717
    %v738 = vpack.c.b16 %v720, %v718
    %v739 = vpack.c.b16 %v723, %v721
    %v740 = vpack.c.b16 %v724, %v722
    %757 = vmatpush.bf16.msra.mxu0 %v739
    %758 = vmatpush.bf16.msra.mxu0 %v737
    %759 = vmatpush.bf16.msra.mxu0 %v735
    %760 = vmatpush.bf16.msra.mxu0 %v733
    %761 = vmatpush.bf16.msra.mxu0 %v731
    %762 = vmatpush.bf16.msra.mxu0 %v729
    %763 = vmatpush.bf16.msra.mxu0 %v727
    %764 = vmatpush.bf16.msra.mxu0 %v725
    %765 = vmatmul.bf16.gmra.mxu0 %v654
    %v766 = vpop.f32.mrf.mxu0
    %v767 = vadd.f32 %v673, %v766
    %v768 = vpop.f32.mrf.mxu0
    %v769 = vadd.f32 %v673, %v768
    %770 = vdwg.mxu0
    %771 = vmatpush.bf16.msra.mxu0 %v740
    %772 = vmatpush.bf16.msra.mxu0 %v738
    %773 = vmatpush.bf16.msra.mxu0 %v736
    %774 = vmatpush.bf16.msra.mxu0 %v734
    %775 = vmatpush.bf16.msra.mxu0 %v732
    %776 = vmatpush.bf16.msra.mxu0 %v730
    %777 = vmatpush.bf16.msra.mxu0 %v728
    %778 = vmatpush.bf16.msra.mxu0 %v726
    %779 = vmatmul.bf16.gmra.mxu0 %v654
    %v780 = vpop.f32.mrf.mxu0
    %v781 = vadd.f32 %v674, %v780
    %v782 = vpop.f32.mrf.mxu0
    %v783 = vadd.f32 %v674, %v782
    %784 = vdwg.mxu0
    %v785 = vmax.f32 %v767, 0.0
    %v786 = vmax.f32 %v781, 0.0
    %v787 = vmax.f32 %v769, 0.0
    %v788 = vmax.f32 %v783, 0.0
    %v789 = vpack.c.bf16 %v787, %v785
    %v790 = vpack.c.bf16 %v788, %v786
    %v791 = vld [vmem:[#allocation7 + $0x20] sm:$0xf]
    %v792 = vld [vmem:[#allocation7 + $0x44] sm:$0xf]
    %v793 = vld [vmem:[#allocation7 + $0x68] sm:$0xf]
    %v794 = vld [vmem:[#allocation7 + $0x8c] sm:$0xf]
    %v795 = vld [vmem:[#allocation7 + $0xb0] sm:$0xf]
    %v796 = vld [vmem:[#allocation7 + $0xd4] sm:$0xf]
    %v797 = vld [vmem:[#allocation7 + $0xf8] sm:$0xf]
    %v798 = vld [vmem:[#allocation7 + $0x11c] sm:$0xf]
    %v799 = vld [vmem:[#allocation7 + $0x140] sm:$0xf]
    %v800 = vld [vmem:[#allocation7 + $0x164] sm:$0xf]
    %v801 = vld [vmem:[#allocation7 + $0x188] sm:$0xf]
    %v802 = vld [vmem:[#allocation7 + $0x1ac] sm:$0xf]
    %v803 = vld [vmem:[#allocation7 + $0x1d0] sm:$0xf]
    %v804 = vld [vmem:[#allocation7 + $0x1f4] sm:$0xf]
    %v805 = vld [vmem:[#allocation7 + $0x218] sm:$0xf]
    %v806 = vld [vmem:[#allocation7 + $0x23c] sm:$0xf]
    %v807 = vld [vmem:[#allocation7 + $0x260] sm:$0xf]
    %v808 = vld [vmem:[#allocation7 + $0x284] sm:$0xf]
    %v809 = vld [vmem:[#allocation7 + $0x2a8] sm:$0xf]
    %v810 = vld [vmem:[#allocation7 + $0x2cc] sm:$0xf]
    %v811 = vld [vmem:[#allocation7 + $0x2f0] sm:$0xf]
    %v812 = vld [vmem:[#allocation7 + $0x314] sm:$0xf]
    %v813 = vld [vmem:[#allocation7 + $0x338] sm:$0xf]
    %v814 = vld [vmem:[#allocation7 + $0x35c] sm:$0xf]
    %v815 = vld [vmem:[#allocation7 + $0x380] sm:$0xf]
    %v816 = vld [vmem:[#allocation7 + $0x3a4] sm:$0xf]
    %v817 = vld [vmem:[#allocation7 + $0x3c8] sm:$0xf]
    %v818 = vld [vmem:[#allocation7 + $0x3ec] sm:$0xf]
    %v819 = vld [vmem:[#allocation7 + $0x410] sm:$0xf]
    %v820 = vld [vmem:[#allocation7 + $0x434] sm:$0xf]
    %v821 = vld [vmem:[#allocation7 + $0x458] sm:$0xf]
    %v822 = vld [vmem:[#allocation7 + $0x47c] sm:$0xf]
    %v823 = vld [vmem:[#allocation8 + $0x8] sm:$0x1]
    %v825 = vperm.slane %v823, 0
    %v859 = vunpack.c.l.b16 %v791
    %v860 = vunpack.c.l.b16 %v792
    %v861 = vunpack.c.l.b16 %v793
    %v862 = vunpack.c.l.b16 %v794
    %v863 = vunpack.c.l.b16 %v795
    %v864 = vunpack.c.l.b16 %v796
    %v865 = vunpack.c.l.b16 %v797
    %v866 = vunpack.c.l.b16 %v798
    %v867 = vunpack.c.l.b16 %v799
    %v868 = vunpack.c.l.b16 %v800
    %v869 = vunpack.c.l.b16 %v801
    %v870 = vunpack.c.l.b16 %v802
    %v871 = vunpack.c.l.b16 %v803
    %v872 = vunpack.c.l.b16 %v804
    %v873 = vunpack.c.l.b16 %v805
    %v874 = vunpack.c.l.b16 %v806
    %v875 = vunpack.c.l.b16 %v807
    %v876 = vunpack.c.l.b16 %v808
    %v877 = vunpack.c.l.b16 %v809
    %v878 = vunpack.c.l.b16 %v810
    %v879 = vunpack.c.l.b16 %v811
    %v880 = vunpack.c.l.b16 %v812
    %v881 = vunpack.c.l.b16 %v813
    %v882 = vunpack.c.l.b16 %v814
    %v883 = vunpack.c.l.b16 %v815
    %v884 = vunpack.c.l.b16 %v816
    %v885 = vunpack.c.l.b16 %v817
    %v886 = vunpack.c.l.b16 %v818
    %v887 = vunpack.c.l.b16 %v819
    %v888 = vunpack.c.l.b16 %v820
    %v889 = vunpack.c.l.b16 %v821
    %v890 = vunpack.c.l.b16 %v822
    %v891 = vpack.c.b16 %v860, %v859
    %v892 = vpack.c.b16 %v862, %v861
    %v893 = vpack.c.b16 %v864, %v863
    %v894 = vpack.c.b16 %v866, %v865
    %v895 = vpack.c.b16 %v868, %v867
    %v896 = vpack.c.b16 %v870, %v869
    %v897 = vpack.c.b16 %v872, %v871
    %v898 = vpack.c.b16 %v874, %v873
    %v899 = vpack.c.b16 %v876, %v875
    %v900 = vpack.c.b16 %v878, %v877
    %v901 = vpack.c.b16 %v880, %v879
    %v902 = vpack.c.b16 %v882, %v881
    %v903 = vpack.c.b16 %v884, %v883
    %v904 = vpack.c.b16 %v886, %v885
    %v905 = vpack.c.b16 %v888, %v887
    %v906 = vpack.c.b16 %v890, %v889
    %923 = vmatpush.bf16.msra.mxu0 %v898
    %924 = vmatpush.bf16.msra.mxu0 %v897
    %925 = vmatpush.bf16.msra.mxu0 %v896
    %926 = vmatpush.bf16.msra.mxu0 %v895
    %927 = vmatpush.bf16.msra.mxu0 %v894
    %928 = vmatpush.bf16.msra.mxu0 %v893
    %929 = vmatpush.bf16.msra.mxu0 %v892
    %930 = vmatpush.bf16.msra.mxu0 %v891
    %931 = vmatmul.bf16.gmra.mxu0 %v789
    %v932 = vpop.f32.mrf.mxu0
    %v933 = vadd.f32 %v825, %v932
    %v934 = vpop.f32.mrf.mxu0
    %v935 = vadd.f32 %v825, %v934
    %936 = vdwg.mxu0
    %937 = vmatpush.bf16.msra.mxu0 %v906
    %938 = vmatpush.bf16.msra.mxu0 %v905
    %939 = vmatpush.bf16.msra.mxu0 %v904
    %940 = vmatpush.bf16.msra.mxu0 %v903
    %941 = vmatpush.bf16.msra.mxu0 %v902
    %942 = vmatpush.bf16.msra.mxu0 %v901
    %943 = vmatpush.bf16.msra.mxu0 %v900
    %944 = vmatpush.bf16.msra.mxu0 %v899
    %945 = vmatmul.bf16.gmra.mxu0 %v790
    %v946 = vpop.f32.mrf.mxu0
    %v947 = vadd.f32 %v933, %v946
    %v948 = vpop.f32.mrf.mxu0
    %v949 = vadd.f32 %v935, %v948
    %950 = vdwg.mxu0
    %v951 = vtanh.pop %v947
    %v952 = vtanh.pop %v949
    %953 = vrot.lane.b32.xlu0 %v477, 16
    %v954 = vpop.permute.xlu0 %953
    %955 = vrot.lane.b32.xlu0 %v478, 16
    %v956 = vpop.permute.xlu0 %955
    %v957 = vadd.f32 %v951, %v954
    %v958 = vadd.f32 %v952, %v956
    %959 = vst [vmem:[#allocation10] sm:$0xff] %v957
    %960 = vst [vmem:[#allocation10 + $0x8] sm:$0xff] %v958
    // Predicated region
    $region34: #{tpu_custom_call.1} parent=1 // pred_check
      _
    $region35: #{tpu_custom_call.1} parent=1 // pred_check_branch
      %962 = sbr.rel (0) target = $region37
    $region36: #{tpu_custom_call.1} parent=1 // pred_region
      %964 = vsyncadd [#allocation4], 0
      %s965 = sshll.u32 [#allocation10], 4
      %s966 = int_to_ptr.vmem [resolvable:$true] %s965
      %s967 = sshll.u32 %s4, 4
      %s968 = int_to_ptr.hbm [resolvable:$true] %s967
      %973 = dma.vmem_to_hbm [thread:$0]  %s966, 256, %s968, [#allocation4], 128, 128, 8
    $region37: #{tpu_custom_call.1} parent=1 // pred_fallthru
      _
    // Predicated region
    $region38: #{tpu_custom_call.1} parent=1 // pred_check
      _
    $region39: #{tpu_custom_call.1} parent=1 // pred_check_branch
      %975 = sbr.rel (0) target = $region41
    $region40: #{tpu_custom_call.1} parent=1 // pred_region
      %977 = dma.done [#allocation4], 256
    $region41: #{tpu_custom_call.1} parent=1 // pred_fallthru
      _
    %978 = vsyncpa [#allocation3], 1
    %979 = vsyncpa [#allocation6], 1
    %980 = vsyncpa [#allocation9], 1
    %981 = vsyncpa [#allocation4], 1

</llo_original>
